<compile_context>
chip_gen: v6e
topology: v6e:2x2x1
jax: 0.10.0
libtpu: 0.0.40
codegen_flags: <defaults>
</compile_context>

<pallas_src>
import functools

import jax
import jax.numpy as jnp
import numpy as np
from jax.experimental import pallas as pl
from jax.experimental.pallas import tpu as pltpu

_LANES = 128


def _combined_loss_kernel(prob_ref, label_ref, coord_ref, clabel_ref,   # inputs
                          out_ref,                                      # output
                          acc_bce, acc_pos, acc_neg, acc_cnt,           # scratch
                          *, gamma, nr, eps, n_valid, n_coord, tile_rows):
    i = pl.program_id(0)

    # ---- init accumulators -------------------------------------------------
    @pl.when(i == 0)
    def _():
        acc_bce[...] = jnp.zeros_like(acc_bce)
        acc_pos[...] = jnp.zeros_like(acc_pos)
        acc_neg[...] = jnp.zeros_like(acc_neg)
        acc_cnt[...] = jnp.zeros_like(acc_cnt)

    # ---- validity mask for padded tail (computed in-register, no extra DMA) -
    row = jax.lax.broadcasted_iota(jnp.int32, (tile_rows, _LANES), 0)
    lane = jax.lax.broadcasted_iota(jnp.int32, (tile_rows, _LANES), 1)
    gidx = (i * tile_rows + row) * _LANES + lane
    valid = gidx < n_valid                                    # (tile_rows, 128)

    # ---- BCE elementwise terms (cast to f32 on load; f32 compute) ----------
    prob = prob_ref[...].astype(jnp.float32) + eps            # prob + self.eps
    label = label_ref[...].astype(jnp.float32)

    # PyTorch BCELoss clamps each log term at -100.
    log_p = jnp.maximum(jnp.log(prob), -100.0)
    log_1mp = jnp.maximum(jnp.log(1.0 - prob), -100.0)
    bce_elem = -(label * log_p + (1.0 - label) * log_1mp)
    acc_bce[...] += jnp.where(valid, bce_elem, 0.0)

    # ---- MaskedMSELoss elementwise terms -----------------------------------
    pos_mask = jnp.logical_and(label == 1.0, valid)           # (tile_rows, 128)
    acc_cnt[...] += jnp.where(pos_mask, 1.0, 0.0)

    coord = coord_ref[...].astype(jnp.float32)                # (C, tile_rows, 128)
    clabel = clabel_ref[...].astype(jnp.float32)

    pos_sq = jnp.where(pos_mask[None], (coord - clabel) ** 2, 0.0)
    acc_pos[...] += jnp.sum(pos_sq, axis=0)                   # reduce over C: VPU adds

    if nr:  # static Python truthiness, mirrors `if self.nr:` in MaskedMSELoss
        neg_mask = jnp.logical_and(label != 1.0, valid)
        neg_sq = jnp.where(neg_mask[None], (coord - nr) ** 2, 0.0)
        acc_neg[...] += jnp.sum(neg_sq, axis=0)

    # ---- epilogue: single cross-lane reductions, divides, NaN guard --------
    @pl.when(i == pl.num_programs(0) - 1)
    def _():
        c = float(n_coord)
        bce = jnp.sum(acc_bce[...]) / float(n_valid)

        n_pos = jnp.sum(acc_cnt[...])
        # NaN if there are no positive rows, exactly like torch's mean of an
        # empty tensor (the reference does not guard this case either).
        pos_mean = jnp.sum(acc_pos[...]) / (n_pos * c)

        if nr:
            n_neg = float(n_valid) - n_pos
            neg_mean = jnp.sum(acc_neg[...]) / (n_neg * c)
            # `if torch.isnan(diff_neg).any(): diff_neg = 0`
            neg_mean = jnp.where(jnp.isnan(neg_mean), 0.0, neg_mean)
            mse = gamma * (pos_mean + neg_mean)
        else:
            mse = gamma * pos_mean

        total = bce + mse
        lane_o = jax.lax.broadcasted_iota(jnp.int32, (1, _LANES), 1)
        out_ref[...] = jnp.where(lane_o == 0, total,
                                 jnp.where(lane_o == 1, bce,
                                           jnp.where(lane_o == 2, mse, 0.0)))


def combined_loss(prob, coord, label, coord_label, *, gamma, nr,
                  eps=1e-9, tile_rows=32):
    """Returns (bce + gamma*mse, bce, mse), mirroring CombinedLoss.forward."""
    prob = prob.reshape(-1)
    label = label.reshape(-1)
    N = prob.shape[0]
    C = coord.shape[1]

    # Pick tile_rows (multiple of 8) and pad N to a multiple of tile_rows*128.
    rows_needed = -(-N // _LANES)
    tile_rows = max(8, min(tile_rows, -(-rows_needed // 8) * 8))
    tile_n = tile_rows * _LANES
    n_pad = -(-N // tile_n) * tile_n
    R = n_pad // _LANES
    grid = (R // tile_rows,)
    pad = n_pad - N

    # Layout plumbing only -- native HBM dtype is preserved (cast in-kernel).
    prob_p = jnp.pad(prob, (0, pad), constant_values=0.5).reshape(R, _LANES)
    label_p = jnp.pad(label, (0, pad), constant_values=0.0).reshape(R, _LANES)
    coord_p = jnp.pad(coord, ((0, pad), (0, 0))).T.reshape(C, R, _LANES)
    clabel_p = jnp.pad(coord_label, ((0, pad), (0, 0))).T.reshape(C, R, _LANES)

    kernel = functools.partial(
        _combined_loss_kernel, gamma=float(gamma), nr=nr, eps=float(eps),
        n_valid=N, n_coord=C, tile_rows=tile_rows)

    out = pl.pallas_call(
        kernel,
        out_shape=jax.ShapeDtypeStruct((1, _LANES), jnp.float32),
        grid_spec=pltpu.PrefetchScalarGridSpec(
            num_scalar_prefetch=0,
            grid=grid,
            in_specs=[
                pl.BlockSpec((tile_rows, _LANES), lambda i: (i, 0)),
                pl.BlockSpec((tile_rows, _LANES), lambda i: (i, 0)),
                pl.BlockSpec((C, tile_rows, _LANES), lambda i: (0, i, 0)),
                pl.BlockSpec((C, tile_rows, _LANES), lambda i: (0, i, 0)),
            ],
            out_specs=pl.BlockSpec((1, _LANES), lambda i: (0, 0)),
            scratch_shapes=[pltpu.VMEM((tile_rows, _LANES), jnp.float32)] * 4,
        ),
        # Single reduction axis over N (accumulator pattern) -> "arbitrary".
        # For very large N on v7x a leading size-2 "parallel" axis with per-core
        # partials could additionally use both TensorCores.
        compiler_params=pltpu.CompilerParams(
            dimension_semantics=("arbitrary",)),
    )(prob_p, label_p, coord_p, clabel_p)

    # forward returns (tensor loss, bce.item(), mse.item())
    return out[0, 0], out[0, 1], out[0, 2]


def _reference(prob, coord, label, coord_label, gamma, nr, eps=1e-9):
    """Pure-JAX mirror of CombinedLoss.forward for a correctness check."""
    p = prob.astype(jnp.float32) + eps
    y = label.astype(jnp.float32)
    bce = jnp.mean(-(y * jnp.maximum(jnp.log(p), -100.0)
                     + (1.0 - y) * jnp.maximum(jnp.log(1.0 - p), -100.0)))
    C = coord.shape[1]
    mask = y == 1.0
    pos_mean = (jnp.sum(jnp.where(mask[:, None], (coord - coord_label) ** 2, 0.0))
                / (jnp.sum(mask) * C))
    if nr:
        nmask = y != 1.0
        neg_mean = (jnp.sum(jnp.where(nmask[:, None], (coord - nr) ** 2, 0.0))
                    / (jnp.sum(nmask) * C))
        neg_mean = jnp.where(jnp.isnan(neg_mean), 0.0, neg_mean)
        mse = gamma * (pos_mean + neg_mean)
    else:
        mse = gamma * pos_mean
    return bce + mse, bce, mse


if __name__ == "__main__":
    key = jax.random.PRNGKey(0)
    k1, k2, k3 = jax.random.split(key, 3)

    N, C = 8, 4                      # batch=8 detections, 4 coordinate targets
    gamma, nr = 2.0, 0.5             # static hyperparams of CombinedLoss(gamma, nr)

    prob = jax.random.uniform(k1, (N,), dtype=jnp.float32, minval=0.05, maxval=0.95)
    label = jnp.array([1.0, 0.0, 1.0, 1.0, 0.0, 1.0, 0.0, 1.0], dtype=jnp.float32)
    coord = jax.random.normal(k2, (N, C), dtype=jnp.float32)
    coord_label = jax.random.normal(k3, (N, C), dtype=jnp.float32)

    total, bce, mse = combined_loss(prob, coord, label, coord_label,
                                    gamma=gamma, nr=nr)
    jax.block_until_ready(total)
    jax.block_until_ready(bce)
    jax.block_until_ready(mse)

    rt, rb, rm = _reference(prob, coord, label, coord_label, gamma, nr)
    np.testing.assert_allclose(np.asarray(total), np.asarray(rt), rtol=1e-5, atol=1e-6)
    np.testing.assert_allclose(np.asarray(bce), np.asarray(rb), rtol=1e-5, atol=1e-6)
    np.testing.assert_allclose(np.asarray(mse), np.asarray(rm), rtol=1e-5, atol=1e-6)

    print("KERNEL_OK")
</pallas_src>

<mosaic_0001>
module attributes {stable_mosaic.version = 11 : i64} {
  func.func @_combined_loss_kernel(%arg0: i32, %arg1: memref<8x128xf32, #tpu.memory_space<vmem>>, %arg2: memref<8x128xf32, #tpu.memory_space<vmem>>, %arg3: memref<4x8x128xf32, #tpu.memory_space<vmem>>, %arg4: memref<4x8x128xf32, #tpu.memory_space<vmem>>, %arg5: memref<1x128xf32, #tpu.memory_space<vmem>>, %arg6: memref<8x128xf32, #tpu.memory_space<vmem>>, %arg7: memref<8x128xf32, #tpu.memory_space<vmem>>, %arg8: memref<8x128xf32, #tpu.memory_space<vmem>>, %arg9: memref<8x128xf32, #tpu.memory_space<vmem>>) attributes {dimension_semantics = [#tpu.dimension_semantics<arbitrary>], iteration_bounds = array<i64: 1>, scalar_prefetch = 0 : i64, scratch_operands = 4 : i64, tpu.core_type = #tpu.core_type<tc>, window_params = [{transform_indices = @transform_0, window_bounds = array<i64: 8, 128>}, {transform_indices = @transform_1, window_bounds = array<i64: 8, 128>}, {transform_indices = @transform_2, window_bounds = array<i64: 4, 8, 128>}, {transform_indices = @transform_3, window_bounds = array<i64: 4, 8, 128>}, {pipeline_mode = #tpu.pipeline_mode<synchronous>, transform_indices = @transform_4, window_bounds = array<i64: 1, 128>}]} {
    %c0_i32 = arith.constant 0 : i32
    %0 = arith.cmpi eq, %arg0, %c0_i32 : i32
    %1 = arith.extui %0 : i1 to i32
    %c0_i32_0 = arith.constant 0 : i32
    %2 = arith.cmpi ne, %1, %c0_i32_0 : i32
    scf.if %2 {
      %cst_44 = arith.constant 0.000000e+00 : f32
      %77 = vector.broadcast %cst_44 : f32 to vector<8x128xf32>
      %c0_45 = arith.constant 0 : index
      %c0_46 = arith.constant 0 : index
      %78 = vector.load %arg6[%c0_45, %c0_46] : memref<8x128xf32, #tpu.memory_space<vmem>>, vector<8x128xf32>
      tpu.vector_store %arg6[%c0_45, %c0_46], %77 {strides = array<i32>} : memref<8x128xf32, #tpu.memory_space<vmem>>, vector<8x128xf32>,
      %cst_47 = arith.constant 0.000000e+00 : f32
      %79 = vector.broadcast %cst_47 : f32 to vector<8x128xf32>
      %c0_48 = arith.constant 0 : index
      %c0_49 = arith.constant 0 : index
      %80 = vector.load %arg7[%c0_48, %c0_49] : memref<8x128xf32, #tpu.memory_space<vmem>>, vector<8x128xf32>
      tpu.vector_store %arg7[%c0_48, %c0_49], %79 {strides = array<i32>} : memref<8x128xf32, #tpu.memory_space<vmem>>, vector<8x128xf32>,
      %cst_50 = arith.constant 0.000000e+00 : f32
      %81 = vector.broadcast %cst_50 : f32 to vector<8x128xf32>
      %c0_51 = arith.constant 0 : index
      %c0_52 = arith.constant 0 : index
      %82 = vector.load %arg8[%c0_51, %c0_52] : memref<8x128xf32, #tpu.memory_space<vmem>>, vector<8x128xf32>
      tpu.vector_store %arg8[%c0_51, %c0_52], %81 {strides = array<i32>} : memref<8x128xf32, #tpu.memory_space<vmem>>, vector<8x128xf32>,
      %cst_53 = arith.constant 0.000000e+00 : f32
      %83 = vector.broadcast %cst_53 : f32 to vector<8x128xf32>
      %c0_54 = arith.constant 0 : index
      %c0_55 = arith.constant 0 : index
      %84 = vector.load %arg9[%c0_54, %c0_55] : memref<8x128xf32, #tpu.memory_space<vmem>>, vector<8x128xf32>
      tpu.vector_store %arg9[%c0_54, %c0_55], %83 {strides = array<i32>} : memref<8x128xf32, #tpu.memory_space<vmem>>, vector<8x128xf32>,
    } else {
    }
    %3 = tpu.iota {dimensions = array<i32: 0>} : vector<8x128xi32>
    %4 = tpu.iota {dimensions = array<i32: 1>} : vector<8x128xi32>
    %c8_i32 = arith.constant 8 : i32
    %5 = arith.muli %arg0, %c8_i32 : i32
    %6 = vector.broadcast %5 : i32 to vector<8x128xi32>
    %7 = arith.addi %6, %3 : vector<8x128xi32>
    %c128_i32 = arith.constant 128 : i32
    %8 = vector.broadcast %c128_i32 : i32 to vector<8x128xi32>
    %9 = arith.muli %7, %8 : vector<8x128xi32>
    %10 = arith.addi %9, %4 : vector<8x128xi32>
    %c8_i32_1 = arith.constant 8 : i32
    %11 = vector.broadcast %c8_i32_1 : i32 to vector<8x128xi32>
    %12 = arith.cmpi slt, %10, %11 : vector<8x128xi32>
    %c0 = arith.constant 0 : index
    %c0_2 = arith.constant 0 : index
    %13 = vector.load %arg1[%c0, %c0_2] : memref<8x128xf32, #tpu.memory_space<vmem>>, vector<8x128xf32>
    %cst = arith.constant 9.99999971E-10 : f32
    %14 = vector.broadcast %cst : f32 to vector<8x128xf32>
    %15 = arith.addf %13, %14 : vector<8x128xf32>
    %c0_3 = arith.constant 0 : index
    %c0_4 = arith.constant 0 : index
    %16 = vector.load %arg2[%c0_3, %c0_4] : memref<8x128xf32, #tpu.memory_space<vmem>>, vector<8x128xf32>
    %17 = math.log %15 : vector<8x128xf32>
    %cst_5 = arith.constant -1.000000e+02 : f32
    %18 = vector.broadcast %cst_5 : f32 to vector<8x128xf32>
    %19 = arith.maximumf %17, %18 : vector<8x128xf32>
    %cst_6 = arith.constant 1.000000e+00 : f32
    %20 = vector.broadcast %cst_6 : f32 to vector<8x128xf32>
    %21 = arith.subf %20, %15 : vector<8x128xf32>
    %22 = math.log %21 : vector<8x128xf32>
    %cst_7 = arith.constant -1.000000e+02 : f32
    %23 = vector.broadcast %cst_7 : f32 to vector<8x128xf32>
    %24 = arith.maximumf %22, %23 : vector<8x128xf32>
    %25 = arith.mulf %16, %19 : vector<8x128xf32>
    %cst_8 = arith.constant 1.000000e+00 : f32
    %26 = vector.broadcast %cst_8 : f32 to vector<8x128xf32>
    %27 = arith.subf %26, %16 : vector<8x128xf32>
    %28 = arith.mulf %27, %24 : vector<8x128xf32>
    %29 = arith.addf %25, %28 : vector<8x128xf32>
    %cst_9 = arith.constant 0.000000e+00 : f32
    %30 = vector.broadcast %cst_9 : f32 to vector<8x128xf32>
    %31 = arith.subf %30, %29 : vector<8x128xf32>
    %c0_10 = arith.constant 0 : index
    %c0_11 = arith.constant 0 : index
    %32 = vector.load %arg6[%c0_10, %c0_11] : memref<8x128xf32, #tpu.memory_space<vmem>>, vector<8x128xf32>
    %cst_12 = arith.constant 0.000000e+00 : f32
    %33 = vector.broadcast %cst_12 : f32 to vector<8x128xf32>
    %34 = arith.select %12, %31, %33 : vector<8x128xi1>, vector<8x128xf32>
    %35 = arith.addf %32, %34 : vector<8x128xf32>
    %c0_13 = arith.constant 0 : index
    %c0_14 = arith.constant 0 : index
    %36 = vector.load %arg6[%c0_13, %c0_14] : memref<8x128xf32, #tpu.memory_space<vmem>>, vector<8x128xf32>
    tpu.vector_store %arg6[%c0_13, %c0_14], %35 {strides = array<i32>} : memref<8x128xf32, #tpu.memory_space<vmem>>, vector<8x128xf32>,
    %cst_15 = arith.constant 1.000000e+00 : f32
    %37 = vector.broadcast %cst_15 : f32 to vector<8x128xf32>
    %38 = arith.cmpf oeq, %16, %37 : vector<8x128xf32>
    %39 = arith.andi %38, %12 : vector<8x128xi1>
    %c0_16 = arith.constant 0 : index
    %c0_17 = arith.constant 0 : index
    %40 = vector.load %arg9[%c0_16, %c0_17] : memref<8x128xf32, #tpu.memory_space<vmem>>, vector<8x128xf32>
    %cst_18 = arith.constant 1.000000e+00 : f32
    %cst_19 = arith.constant 0.000000e+00 : f32
    %41 = vector.broadcast %cst_18 : f32 to vector<8x128xf32>
    %42 = vector.broadcast %cst_19 : f32 to vector<8x128xf32>
    %43 = arith.select %39, %41, %42 : vector<8x128xi1>, vector<8x128xf32>
    %44 = arith.addf %40, %43 : vector<8x128xf32>
    %c0_20 = arith.constant 0 : index
    %c0_21 = arith.constant 0 : index
    %45 = vector.load %arg9[%c0_20, %c0_21] : memref<8x128xf32, #tpu.memory_space<vmem>>, vector<8x128xf32>
    tpu.vector_store %arg9[%c0_20, %c0_21], %44 {strides = array<i32>} : memref<8x128xf32, #tpu.memory_space<vmem>>, vector<8x128xf32>,
    %c0_22 = arith.constant 0 : index
    %c0_23 = arith.constant 0 : index
    %c0_24 = arith.constant 0 : index
    %46 = vector.load %arg3[%c0_22, %c0_23, %c0_24] : memref<4x8x128xf32, #tpu.memory_space<vmem>>, vector<4x8x128xf32>
    %c0_25 = arith.constant 0 : index
    %c0_26 = arith.constant 0 : index
    %c0_27 = arith.constant 0 : index
    %47 = vector.load %arg4[%c0_25, %c0_26, %c0_27] : memref<4x8x128xf32, #tpu.memory_space<vmem>>, vector<4x8x128xf32>
    %48 = vector.shape_cast %39 : vector<8x128xi1> to vector<1x8x128xi1>
    %49 = arith.subf %46, %47 : vector<4x8x128xf32>
    %50 = arith.mulf %49, %49 : vector<4x8x128xf32>
    %cst_28 = arith.constant 0.000000e+00 : f32
    %51 = vector.shape_cast %48 : vector<1x8x128xi1> to vector<1x8x128xi1>
    %52 = vector.broadcast %51 : vector<1x8x128xi1> to vector<4x8x128xi1>
    %53 = vector.broadcast %cst_28 : f32 to vector<4x8x128xf32>
    %54 = arith.select %52, %50, %53 : vector<4x8x128xi1>, vector<4x8x128xf32>
    %c0_29 = arith.constant 0 : index
    %c0_30 = arith.constant 0 : index
    %55 = vector.load %arg7[%c0_29, %c0_30] : memref<8x128xf32, #tpu.memory_space<vmem>>, vector<8x128xf32>
    %cst_31 = arith.constant dense<0.000000e+00> : vector<8x128xf32>
    %56 = vector.multi_reduction <add>, %54, %cst_31 [0] : vector<4x8x128xf32> to vector<8x128xf32>
    %57 = arith.addf %55, %56 : vector<8x128xf32>
    %c0_32 = arith.constant 0 : index
    %c0_33 = arith.constant 0 : index
    %58 = vector.load %arg7[%c0_32, %c0_33] : memref<8x128xf32, #tpu.memory_space<vmem>>, vector<8x128xf32>
    tpu.vector_store %arg7[%c0_32, %c0_33], %57 {strides = array<i32>} : memref<8x128xf32, #tpu.memory_space<vmem>>, vector<8x128xf32>,
    %cst_34 = arith.constant 1.000000e+00 : f32
    %59 = vector.broadcast %cst_34 : f32 to vector<8x128xf32>
    %60 = arith.cmpf one, %16, %59 : vector<8x128xf32>
    %61 = arith.andi %60, %12 : vector<8x128xi1>
    %62 = vector.shape_cast %61 : vector<8x128xi1> to vector<1x8x128xi1>
    %cst_35 = arith.constant 5.000000e-01 : f32
    %63 = vector.broadcast %cst_35 : f32 to vector<4x8x128xf32>
    %64 = arith.subf %46, %63 : vector<4x8x128xf32>
    %65 = arith.mulf %64, %64 : vector<4x8x128xf32>
    %cst_36 = arith.constant 0.000000e+00 : f32
    %66 = vector.shape_cast %62 : vector<1x8x128xi1> to vector<1x8x128xi1>
    %67 = vector.broadcast %66 : vector<1x8x128xi1> to vector<4x8x128xi1>
    %68 = vector.broadcast %cst_36 : f32 to vector<4x8x128xf32>
    %69 = arith.select %67, %65, %68 : vector<4x8x128xi1>, vector<4x8x128xf32>
    %c0_37 = arith.constant 0 : index
    %c0_38 = arith.constant 0 : index
    %70 = vector.load %arg8[%c0_37, %c0_38] : memref<8x128xf32, #tpu.memory_space<vmem>>, vector<8x128xf32>
    %cst_39 = arith.constant dense<0.000000e+00> : vector<8x128xf32>
    %71 = vector.multi_reduction <add>, %69, %cst_39 [0] : vector<4x8x128xf32> to vector<8x128xf32>
    %72 = arith.addf %70, %71 : vector<8x128xf32>
    %c0_40 = arith.constant 0 : index
    %c0_41 = arith.constant 0 : index
    %73 = vector.load %arg8[%c0_40, %c0_41] : memref<8x128xf32, #tpu.memory_space<vmem>>, vector<8x128xf32>
    tpu.vector_store %arg8[%c0_40, %c0_41], %72 {strides = array<i32>} : memref<8x128xf32, #tpu.memory_space<vmem>>, vector<8x128xf32>,
    %c0_i32_42 = arith.constant 0 : i32
    %74 = arith.cmpi eq, %arg0, %c0_i32_42 : i32
    %75 = arith.extui %74 : i1 to i32
    %c0_i32_43 = arith.constant 0 : i32
    %76 = arith.cmpi ne, %75, %c0_i32_43 : i32
    scf.if %76 {
      %c0_44 = arith.constant 0 : index
      %c0_45 = arith.constant 0 : index
      %77 = vector.load %arg6[%c0_44, %c0_45] : memref<8x128xf32, #tpu.memory_space<vmem>>, vector<8x128xf32>
      %78 = vector.shape_cast %77 : vector<8x128xf32> to vector<1x8x128xf32>
      %cst_46 = arith.constant dense<0.000000e+00> : vector<1xf32>
      %79 = vector.multi_reduction <add>, %78, %cst_46 [1, 2] : vector<1x8x128xf32> to vector<1xf32>
      %80 = vector.shape_cast %79 : vector<1xf32> to vector<1x1x1xf32>
      %81 = vector.extract %80[0, 0, 0] : f32 from vector<1x1x1xf32>
      %cst_47 = arith.constant 8.000000e+00 : f32
      %82 = arith.divf %81, %cst_47 : f32
      %c0_48 = arith.constant 0 : index
      %c0_49 = arith.constant 0 : index
      %83 = vector.load %arg9[%c0_48, %c0_49] : memref<8x128xf32, #tpu.memory_space<vmem>>, vector<8x128xf32>
      %84 = vector.shape_cast %83 : vector<8x128xf32> to vector<1x8x128xf32>
      %cst_50 = arith.constant dense<0.000000e+00> : vector<1xf32>
      %85 = vector.multi_reduction <add>, %84, %cst_50 [1, 2] : vector<1x8x128xf32> to vector<1xf32>
      %86 = vector.shape_cast %85 : vector<1xf32> to vector<1x1x1xf32>
      %87 = vector.extract %86[0, 0, 0] : f32 from vector<1x1x1xf32>
      %c0_51 = arith.constant 0 : index
      %c0_52 = arith.constant 0 : index
      %88 = vector.load %arg7[%c0_51, %c0_52] : memref<8x128xf32, #tpu.memory_space<vmem>>, vector<8x128xf32>
      %89 = vector.shape_cast %88 : vector<8x128xf32> to vector<1x8x128xf32>
      %cst_53 = arith.constant dense<0.000000e+00> : vector<1xf32>
      %90 = vector.multi_reduction <add>, %89, %cst_53 [1, 2] : vector<1x8x128xf32> to vector<1xf32>
      %91 = vector.shape_cast %90 : vector<1xf32> to vector<1x1x1xf32>
      %92 = vector.extract %91[0, 0, 0] : f32 from vector<1x1x1xf32>
      %cst_54 = arith.constant 4.000000e+00 : f32
      %93 = arith.mulf %87, %cst_54 : f32
      %94 = arith.divf %92, %93 : f32
      %cst_55 = arith.constant 8.000000e+00 : f32
      %95 = arith.subf %cst_55, %87 : f32
      %c0_56 = arith.constant 0 : index
      %c0_57 = arith.constant 0 : index
      %96 = vector.load %arg8[%c0_56, %c0_57] : memref<8x128xf32, #tpu.memory_space<vmem>>, vector<8x128xf32>
      %97 = vector.shape_cast %96 : vector<8x128xf32> to vector<1x8x128xf32>
      %cst_58 = arith.constant dense<0.000000e+00> : vector<1xf32>
      %98 = vector.multi_reduction <add>, %97, %cst_58 [1, 2] : vector<1x8x128xf32> to vector<1xf32>
      %99 = vector.shape_cast %98 : vector<1xf32> to vector<1x1x1xf32>
      %100 = vector.extract %99[0, 0, 0] : f32 from vector<1x1x1xf32>
      %cst_59 = arith.constant 4.000000e+00 : f32
      %101 = arith.mulf %95, %cst_59 : f32
      %102 = arith.divf %100, %101 : f32
      %103 = arith.cmpf one, %102, %102 : f32
      %cst_60 = arith.constant 0.000000e+00 : f32
      %104 = arith.select %103, %cst_60, %102 : f32
      %105 = arith.addf %94, %104 : f32
      %cst_61 = arith.constant 2.000000e+00 : f32
      %106 = arith.mulf %cst_61, %105 : f32
      %107 = arith.addf %82, %106 : f32
      %108 = tpu.iota {dimensions = array<i32: 1>} : vector<1x128xi32>
      %c0_i32_62 = arith.constant 0 : i32
      %109 = vector.broadcast %c0_i32_62 : i32 to vector<1x128xi32>
      %110 = arith.cmpi eq, %108, %109 : vector<1x128xi32>
      %c1_i32 = arith.constant 1 : i32
      %111 = vector.broadcast %c1_i32 : i32 to vector<1x128xi32>
      %112 = arith.cmpi eq, %108, %111 : vector<1x128xi32>
      %c2_i32 = arith.constant 2 : i32
      %113 = vector.broadcast %c2_i32 : i32 to vector<1x128xi32>
      %114 = arith.cmpi eq, %108, %113 : vector<1x128xi32>
      %cst_63 = arith.constant 0.000000e+00 : f32
      %115 = vector.broadcast %106 : f32 to vector<1x128xf32>
      %116 = vector.broadcast %cst_63 : f32 to vector<1x128xf32>
      %117 = arith.select %114, %115, %116 : vector<1x128xi1>, vector<1x128xf32>
      %118 = vector.broadcast %82 : f32 to vector<1x128xf32>
      %119 = arith.select %112, %118, %117 : vector<1x128xi1>, vector<1x128xf32>
      %120 = vector.broadcast %107 : f32 to vector<1x128xf32>
      %121 = arith.select %110, %120, %119 : vector<1x128xi1>, vector<1x128xf32>
      %c0_64 = arith.constant 0 : index
      %c0_65 = arith.constant 0 : index
      %122 = vector.load %arg5[%c0_64, %c0_65] : memref<1x128xf32, #tpu.memory_space<vmem>>, vector<1x128xf32>
      tpu.vector_store %arg5[%c0_64, %c0_65], %121 {strides = array<i32>} : memref<1x128xf32, #tpu.memory_space<vmem>>, vector<1x128xf32>,
    } else {
    }
    return
  }
  func.func @transform_0(%arg0: i32) -> (i32, i32) {
    %c0_i32 = arith.constant 0 : i32
    %c0_i32_0 = arith.constant 0 : i32
    return %arg0, %c0_i32 : i32, i32
  }
  func.func @transform_1(%arg0: i32) -> (i32, i32) {
    %c0_i32 = arith.constant 0 : i32
    %c0_i32_0 = arith.constant 0 : i32
    return %arg0, %c0_i32 : i32, i32
  }
  func.func @transform_2(%arg0: i32) -> (i32, i32, i32) {
    %c0_i32 = arith.constant 0 : i32
    %c0_i32_0 = arith.constant 0 : i32
    %c0_i32_1 = arith.constant 0 : i32
    return %c0_i32, %arg0, %c0_i32_0 : i32, i32, i32
  }
  func.func @transform_3(%arg0: i32) -> (i32, i32, i32) {
    %c0_i32 = arith.constant 0 : i32
    %c0_i32_0 = arith.constant 0 : i32
    %c0_i32_1 = arith.constant 0 : i32
    return %c0_i32, %arg0, %c0_i32_0 : i32, i32, i32
  }
  func.func @transform_4(%arg0: i32) -> (i32, i32) {
    %c0_i32 = arith.constant 0 : i32
    %c0_i32_0 = arith.constant 0 : i32
    %c0_i32_1 = arith.constant 0 : i32
    return %c0_i32, %c0_i32_0 : i32, i32
  }
}

</mosaic_0001>

<llo_original>
// kernel: tpu_custom_call.1
$region0: #{tpu_custom_call.1}
  #allocation0 [shape = 'u32[]', space=smem, size = 0x4, offset = 0x4, fixed_abs, tag = 'smem constant byte address 0x4 - core index']
  #allocation1 [shape = 'u32[144,128]{1,0:T(1,128)}', space=vmem, size = 0x12000, scoped, tag = 'internal scratch']
  #allocation2 [shape = 'f32[8,128]{1,0:T(8,128)}', space=vmem, size = 0x1000, scoped, tag = 'scratch operand']
  #allocation3 [shape = 'f32[8,128]{1,0:T(8,128)}', space=vmem, size = 0x1000, scoped, tag = 'scratch operand']
  #allocation4 [shape = 'f32[8,128]{1,0:T(8,128)}', space=vmem, size = 0x1000, scoped, tag = 'scratch operand']
  #allocation5 [shape = 'f32[8,128]{1,0:T(8,128)}', space=vmem, size = 0x1000, scoped, tag = 'scratch operand']
  %s0 = inlined_call_operand.hbm [shape: f32[8,128], index: 0, kind: input, shape index: {}]
  %s1 = inlined_call_operand.hbm [shape: f32[8,128], index: 1, kind: input, shape index: {}]
  %s2 = inlined_call_operand.hbm [shape: f32[4,8,128], index: 2, kind: input, shape index: {}]
  %s3 = inlined_call_operand.hbm [shape: f32[4,8,128], index: 3, kind: input, shape index: {}]
  %s4 = inlined_call_operand.hbm [shape: f32[1,128], index: 4, kind: output, shape index: {}]
  %s5 = sld [smem:[#allocation0]]
  $region50: #{tpu_custom_call.1} parent=0
    _
  %s7 = ssub.s32 1, %s5
  %s8 = scalar_select 0, %s7, %s5
  $region1: #{tpu_custom_call.1} parent=0
    #allocation6 [shape = 'u8[4096]{0}', space=vmem, size = 0x1000, scoped, tag = 'input window, operand 0, single buffered']
    #allocation7 [shape = 's32[1]{0}', space=sflag, size = 0x4, scoped, tag = 'scoped memory for tpu_custom_call.1']
    #allocation8 [shape = 's32[1]{0}', space=sflag, size = 0x4, scoped, tag = 'scoped memory for tpu_custom_call.1']
    #allocation9 [shape = 'u8[4096]{0}', space=vmem, size = 0x1000, scoped, tag = 'input window, operand 1, single buffered']
    #allocation10 [shape = 's32[1]{0}', space=sflag, size = 0x4, scoped, tag = 'scoped memory for tpu_custom_call.1']
    #allocation11 [shape = 'u8[16384]{0}', space=vmem, size = 0x4000, scoped, tag = 'input window, operand 2, single buffered']
    #allocation12 [shape = 'u8[16384]{0}', space=vmem, size = 0x4000, scoped, tag = 'input window, operand 3, single buffered']
    #allocation13 [shape = 's32[1]{0}', space=sflag, size = 0x4, scoped, tag = 'scoped memory for tpu_custom_call.1']
    #allocation14 [shape = 'u8[512]{0}', space=vmem, size = 0x400, scoped, tag = 'output window, operand 0, single buffered']
    %9 = vsyncpa [#allocation7], 0
    %10 = vsyncpa [#allocation10], 0
    %11 = vsyncpa [#allocation13], 0
    %12 = vsyncpa [#allocation8], 0
    // Predicated region
    $region2: #{tpu_custom_call.1} parent=1 // pred_check
      _
    $region3: #{tpu_custom_call.1} parent=1 // pred_check_branch
      %14 = sbr.rel (0) target = $region5
    $region4: #{tpu_custom_call.1} parent=1 // pred_region
      %s16 = ssub.s32 128, 128
      %17 = vsyncadd [#allocation7], %s16
      %s19 = sshll.u32 [#allocation6], 4
      %s20 = int_to_ptr.vmem [resolvable:$true] %s19
      %22 = dma.hbm_to_vmem [thread:$0]  %s0, 128, %s20, [#allocation7]
    $region5: #{tpu_custom_call.1} parent=1 // pred_fallthru
      _
    // Predicated region
    $region6: #{tpu_custom_call.1} parent=1 // pred_check
      _
    $region7: #{tpu_custom_call.1} parent=1 // pred_check_branch
      %24 = sbr.rel (0) target = $region9
    $region8: #{tpu_custom_call.1} parent=1 // pred_region
      %s26 = ssub.s32 128, 128
      %27 = vsyncadd [#allocation10], %s26
      %s29 = sshll.u32 [#allocation9], 4
      %s30 = int_to_ptr.vmem [resolvable:$true] %s29
      %32 = dma.hbm_to_vmem [thread:$0]  %s1, 128, %s30, [#allocation10]
    $region9: #{tpu_custom_call.1} parent=1 // pred_fallthru
      _
    // Predicated region
    $region10: #{tpu_custom_call.1} parent=1 // pred_check
      _
    $region11: #{tpu_custom_call.1} parent=1 // pred_check_branch
      %34 = sbr.rel (0) target = $region13
    $region12: #{tpu_custom_call.1} parent=1 // pred_region
      %s36 = ssub.s32 512, 512
      %37 = vsyncadd [#allocation10], %s36
      %s38 = sshll.u32 [#allocation11], 4
      %s39 = int_to_ptr.vmem [resolvable:$true] %s38
      %44 = dma.hbm_to_vmem [thread:$0]  %s2, 512, %s39, [#allocation10], 128, 128, 8
    $region13: #{tpu_custom_call.1} parent=1 // pred_fallthru
      _
    // Predicated region
    $region14: #{tpu_custom_call.1} parent=1 // pred_check
      _
    $region15: #{tpu_custom_call.1} parent=1 // pred_check_branch
      %46 = sbr.rel (0) target = $region17
    $region16: #{tpu_custom_call.1} parent=1 // pred_region
      %s48 = ssub.s32 512, 512
      %49 = vsyncadd [#allocation13], %s48
      %s50 = sshll.u32 [#allocation12], 4
      %s51 = int_to_ptr.vmem [resolvable:$true] %s50
      %56 = dma.hbm_to_vmem [thread:$0]  %s3, 512, %s51, [#allocation13], 128, 128, 8
    $region17: #{tpu_custom_call.1} parent=1 // pred_fallthru
      _
    // Predicated region
    $region18: #{tpu_custom_call.1} parent=1 // pred_check
      _
    $region19: #{tpu_custom_call.1} parent=1 // pred_check_branch
      %58 = sbr.rel (0) target = $region21
    $region20: #{tpu_custom_call.1} parent=1 // pred_region
      %59 = dma.done [#allocation7], 128
    $region21: #{tpu_custom_call.1} parent=1 // pred_fallthru
      _
    // Predicated region
    $region22: #{tpu_custom_call.1} parent=1 // pred_check
      _
    $region23: #{tpu_custom_call.1} parent=1 // pred_check_branch
      %61 = sbr.rel (0) target = $region25
    $region24: #{tpu_custom_call.1} parent=1 // pred_region
      %62 = dma.done [#allocation10], 128
    $region25: #{tpu_custom_call.1} parent=1 // pred_fallthru
      _
    // Predicated region
    $region26: #{tpu_custom_call.1} parent=1 // pred_check
      _
    $region27: #{tpu_custom_call.1} parent=1 // pred_check_branch
      %64 = sbr.rel (0) target = $region29
    $region28: #{tpu_custom_call.1} parent=1 // pred_region
      %65 = dma.done [#allocation10], 512
    $region29: #{tpu_custom_call.1} parent=1 // pred_fallthru
      _
    // Predicated region
    $region30: #{tpu_custom_call.1} parent=1 // pred_check
      _
    $region31: #{tpu_custom_call.1} parent=1 // pred_check_branch
      %67 = sbr.rel (0) target = $region33
    $region32: #{tpu_custom_call.1} parent=1 // pred_region
      %68 = dma.done [#allocation13], 512
    $region33: #{tpu_custom_call.1} parent=1 // pred_fallthru
      _
    %p69 = scmp.eq.s32.totalorder 0, 0
    // Predicated region
    $region34: #{tpu_custom_call.1} parent=1 // pred_check
      %p70 = pneg %p69
    $region35: #{tpu_custom_call.1} parent=1 // pred_check_branch
      %72 = sbr.rel (%p70) target = $region37
    $region36: #{tpu_custom_call.1} parent=1 // pred_region
      %73 = vst [vmem:[#allocation2] sm:$0xff] 0.0
      %74 = vst [vmem:[#allocation3] sm:$0xff] 0.0
      %75 = vst [vmem:[#allocation4] sm:$0xff] 0.0
      %76 = vst [vmem:[#allocation5] sm:$0xff] 0.0
    $region37: #{tpu_custom_call.1} parent=1 // pred_fallthru
      _
    %v77 = vlaneseq
    %v78 = vshrl.u32 %v77, 7
    %v79 = vlaneseq
    %v80 = vand.u32 %v79, 127
    %s81 = smul.u32 0, 8
    %v82 = vstv %s81
    %v83 = vadd.s32 %v82, %v78
    %v84 = vmul.u32 %v83, 128
    %v85 = vadd.s32 %v84, %v80
    %vm86 = vcmp.lt.s32.totalorder %v85, 8
    %v87 = vld [vmem:[#allocation6] sm:$0xff]
    %v88 = vadd.f32 %v87, 1e-09
    %v89 = vld [vmem:[#allocation9] sm:$0xff]
    %v90 = vlog2.pop %v88
    %v91 = vmul.f32 %v90, 0.6931472
    %v92 = vmax.f32 %v91, -100.0
    %v93 = vsub.f32 1.0, %v88
    %v94 = vlog2.pop %v93
    %v95 = vmul.f32 %v94, 0.6931472
    %v96 = vmax.f32 %v95, -100.0
    %v97 = vmul.f32 %v89, %v92
    %v98 = vsub.f32 1.0, %v89
    %v99 = vmul.f32 %v98, %v96
    %v100 = vadd.f32 %v97, %v99
    %v101 = vsub.f32 0.0, %v100
    %v102 = vld [vmem:[#allocation2] sm:$0xff]
    %v103 = vsel %vm86, %v101, 0.0
    %v104 = vadd.f32 %v102, %v103
    %105 = vst [vmem:[#allocation2] sm:$0xff] %v104
    %vm106 = vcmp.eq.f32.partialorder %v89, 1.0
    %vm107 = vmand %vm106, %vm86
    %v108 = vld [vmem:[#allocation5] sm:$0xff]
    %v109 = vsel %vm107, 1.0, 0.0
    %v110 = vadd.f32 %v108, %v109
    %111 = vst [vmem:[#allocation5] sm:$0xff] %v110
    %v112 = vld [vmem:[#allocation11] sm:$0xff]
    %v113 = vld [vmem:[#allocation11 + $0x8] sm:$0xff]
    %v114 = vld [vmem:[#allocation11 + $0x10] sm:$0xff]
    %v115 = vld [vmem:[#allocation11 + $0x18] sm:$0xff]
    %v116 = vld [vmem:[#allocation12] sm:$0xff]
    %v117 = vld [vmem:[#allocation12 + $0x8] sm:$0xff]
    %v118 = vld [vmem:[#allocation12 + $0x10] sm:$0xff]
    %v119 = vld [vmem:[#allocation12 + $0x18] sm:$0xff]
    %v120 = vsub.f32 %v112, %v116
    %v121 = vsub.f32 %v113, %v117
    %v122 = vsub.f32 %v114, %v118
    %v123 = vsub.f32 %v115, %v119
    %v124 = vmul.f32 %v120, %v120
    %v125 = vmul.f32 %v121, %v121
    %v126 = vmul.f32 %v122, %v122
    %v127 = vmul.f32 %v123, %v123
    %v128 = vsel %vm107, 1, 0
    %vm129 = vcmp.eq.s32.totalorder %v128, 1
    %v130 = vsel %vm129, %v124, 0.0
    %v131 = vsel %vm129, %v125, 0.0
    %v132 = vsel %vm129, %v126, 0.0
    %v133 = vsel %vm129, %v127, 0.0
    %v134 = vld [vmem:[#allocation3] sm:$0xff]
    %v135 = vadd.f32 %v130, %v131
    %v136 = vadd.f32 %v135, %v132
    %v137 = vadd.f32 %v136, %v133
    %v138 = vadd.f32 %v134, %v137
    %139 = vst [vmem:[#allocation3] sm:$0xff] %v138
    %vm140 = vcmp.ne.f32.partialorder %v89, 1.0
    %vm141 = vmand %vm140, %vm86
    %v142 = vsub.f32 %v112, 0.5
    %v143 = vsub.f32 %v113, 0.5
    %v144 = vsub.f32 %v114, 0.5
    %v145 = vsub.f32 %v115, 0.5
    %v146 = vmul.f32 %v142, %v142
    %v147 = vmul.f32 %v143, %v143
    %v148 = vmul.f32 %v144, %v144
    %v149 = vmul.f32 %v145, %v145
    %v150 = vsel %vm141, 1, 0
    %vm151 = vcmp.eq.s32.totalorder %v150, 1
    %v152 = vsel %vm151, %v146, 0.0
    %v153 = vsel %vm151, %v147, 0.0
    %v154 = vsel %vm151, %v148, 0.0
    %v155 = vsel %vm151, %v149, 0.0
    %v156 = vld [vmem:[#allocation4] sm:$0xff]
    %v157 = vadd.f32 %v152, %v153
    %v158 = vadd.f32 %v157, %v154
    %v159 = vadd.f32 %v158, %v155
    %v160 = vadd.f32 %v156, %v159
    %161 = vst [vmem:[#allocation4] sm:$0xff] %v160
    // Predicated region
    $region38: #{tpu_custom_call.1} parent=1 // pred_check
      %p162 = pneg %p69
    $region39: #{tpu_custom_call.1} parent=1 // pred_check_branch
      %164 = sbr.rel (%p162) target = $region41
    $region40: #{tpu_custom_call.1} parent=1 // pred_region
      %v165 = vld [vmem:[#allocation2] sm:$0xff]
      %166 = vadd.xlane.f32.xlu0 %v165
      %v167 = vpop.xlane.xlu0 %166
      %v168 = vrot.slane %v167, 4
      %v169 = vadd.f32 %v167, %v168
      %v170 = vrot.slane %v169, 2
      %v171 = vadd.f32 %v169, %v170
      %v172 = vrot.slane %v171, 1
      %v173 = vadd.f32 %v171, %v172
      %s174 = vtos %v173
      %v175 = vrcp.pop 8.0
      %s176 = vtos %v175
      %s177 = smul.f32 %s174, %s176
      %v178 = vld [vmem:[#allocation5] sm:$0xff]
      %179 = vadd.xlane.f32.xlu0 %v178
      %v180 = vpop.xlane.xlu0 %179
      %v181 = vrot.slane %v180, 4
      %v182 = vadd.f32 %v180, %v181
      %v183 = vrot.slane %v182, 2
      %v184 = vadd.f32 %v182, %v183
      %v185 = vrot.slane %v184, 1
      %v186 = vadd.f32 %v184, %v185
      %s187 = vtos %v186
      %v188 = vld [vmem:[#allocation3] sm:$0xff]
      %189 = vadd.xlane.f32.xlu0 %v188
      %v190 = vpop.xlane.xlu0 %189
      %v191 = vrot.slane %v190, 4
      %v192 = vadd.f32 %v190, %v191
      %v193 = vrot.slane %v192, 2
      %v194 = vadd.f32 %v192, %v193
      %v195 = vrot.slane %v194, 1
      %v196 = vadd.f32 %v194, %v195
      %s197 = vtos %v196
      %s198 = smul.f32 %s187, 4.0
      %v199 = vstv %s198
      %v200 = vrcp.pop %v199
      %s201 = vtos %v200
      %s202 = smul.f32 %s197, %s201
      %s203 = ssub.f32 8.0, %s187
      %v204 = vld [vmem:[#allocation4] sm:$0xff]
      %205 = vadd.xlane.f32.xlu0 %v204
      %v206 = vpop.xlane.xlu0 %205
      %v207 = vrot.slane %v206, 4
      %v208 = vadd.f32 %v206, %v207
      %v209 = vrot.slane %v208, 2
      %v210 = vadd.f32 %v208, %v209
      %v211 = vrot.slane %v210, 1
      %v212 = vadd.f32 %v210, %v211
      %s213 = vtos %v212
      %s214 = smul.f32 %s203, 4.0
      %v215 = vstv %s214
      %v216 = vrcp.pop %v215
      %s217 = vtos %v216
      %s218 = smul.f32 %s213, %s217
      %p219 = scmp.ne.f32.partialorder %s218, %s218
      %s220 = scalar_select %p219, 0.0, %s218
      %s221 = sadd.f32 %s202, %s220
      %s222 = smul.f32 %s221, 2.0
      %s223 = sadd.f32 %s177, %s222
      %vm224 = vcmp.eq.s32.totalorder %v80, 0
      %vm225 = vcmp.eq.s32.totalorder %v80, 1
      %vm226 = vcmp.eq.s32.totalorder %v80, 2
      %v227 = vstv %s222
      %v228 = vsel %vm226, %v227, 0.0
      %v229 = vstv %s177
      %v230 = vsel %vm225, %v229, %v228
      %v231 = vstv %s223
      %v232 = vsel %vm224, %v231, %v230
      %233 = vst [vmem:[#allocation14] sm:$0x1] %v232
    $region41: #{tpu_custom_call.1} parent=1 // pred_fallthru
      _
    // Predicated region
    $region42: #{tpu_custom_call.1} parent=1 // pred_check
      _
    $region43: #{tpu_custom_call.1} parent=1 // pred_check_branch
      %235 = sbr.rel (0) target = $region45
    $region44: #{tpu_custom_call.1} parent=1 // pred_region
      %s237 = ssub.s32 16, 16
      %238 = vsyncadd [#allocation8], %s237
      %s240 = sshll.u32 [#allocation14], 4
      %s241 = int_to_ptr.vmem [resolvable:$true] %s240
      %243 = dma.vmem_to_hbm [thread:$0]  %s241, 16, %s4, [#allocation8]
    $region45: #{tpu_custom_call.1} parent=1 // pred_fallthru
      _
    // Predicated region
    $region46: #{tpu_custom_call.1} parent=1 // pred_check
      _
    $region47: #{tpu_custom_call.1} parent=1 // pred_check_branch
      %245 = sbr.rel (0) target = $region49
    $region48: #{tpu_custom_call.1} parent=1 // pred_region
      %246 = dma.done [#allocation8], 16
    $region49: #{tpu_custom_call.1} parent=1 // pred_fallthru
      _
    %247 = vsyncpa [#allocation7], 1
    %248 = vsyncpa [#allocation10], 1
    %249 = vsyncpa [#allocation13], 1
    %250 = vsyncpa [#allocation8], 1

</llo_original>
